<compile_context>
chip_gen: v7x
topology: tpu7x:2x2x1
jax: 0.10.0
libtpu: 0.0.40
codegen_flags: <defaults>
</compile_context>

<pallas_src>
import functools

import jax
import jax.numpy as jnp
from jax.experimental import pallas as pl
from jax.experimental.pallas import tpu as pltpu


# ----------------------------------------------------------------------------
# Module forward: pure pass-through (no kernel — see perf review).
# ----------------------------------------------------------------------------
def commit_loss_forward(model_output, gt_image):
    """JAX equivalent of CommitLoss.forward: returns the precomputed scalar."""
    loss = model_output['loss_commit']
    return loss, {'loss_commit': loss}


# ----------------------------------------------------------------------------
# Fused commit-loss reduction kernel: mean((z_e - sg(z_q))^2).
# ----------------------------------------------------------------------------
def _commit_loss_reduce_kernel(ze_ref, zq_ref, out_ref, acc_ref, *, inv_count):
    i = pl.program_id(0)

    @pl.when(i == 0)
    def _():
        acc_ref[...] = jnp.zeros_like(acc_ref)

    diff = ze_ref[...].astype(jnp.float32) - zq_ref[...].astype(jnp.float32)
    acc_ref[...] += jnp.sum(diff * diff)

    @pl.when(i == pl.num_programs(0) - 1)
    def _():
        out_ref[...] = acc_ref[...] * jnp.float32(inv_count)


def commit_loss_from_latents(z_e, z_q):
    """Compute the commit loss mean((z_e - stop_grad(z_q))^2) with Pallas."""
    d = z_e.shape[-1]
    ze2 = jnp.reshape(z_e, (-1, d))
    zq2 = jnp.reshape(jax.lax.stop_gradient(z_q), (-1, d))
    n = ze2.shape[0]

    # Largest 8-divisible row tile that evenly divides N (N itself is fine if
    # it is the full extent).
    row_tile = n
    for cand in (1024, 512, 256, 128, 64, 32, 16, 8):
        if n % cand == 0:
            row_tile = cand
            break
    grid = (n // row_tile,)

    kernel = functools.partial(
        _commit_loss_reduce_kernel, inv_count=1.0 / float(n * d))

    elem_bytes = jnp.dtype(ze2.dtype).itemsize
    cost = pl.CostEstimate(
        flops=3 * n * d,            # sub, mul, add-reduce
        transcendentals=0,
        bytes_accessed=2 * n * d * elem_bytes + 4,
    )

    out = pl.pallas_call(
        kernel,
        out_shape=jax.ShapeDtypeStruct((1, 1), jnp.float32),
        grid_spec=pltpu.PrefetchScalarGridSpec(
            num_scalar_prefetch=0,
            grid=grid,
            in_specs=[
                pl.BlockSpec((row_tile, d), lambda i: (i, 0)),
                pl.BlockSpec((row_tile, d), lambda i: (i, 0)),
            ],
            out_specs=pl.BlockSpec((1, 1), lambda i: (0, 0)),
            scratch_shapes=[pltpu.VMEM((1, 1), jnp.float32)],
        ),
        compiler_params=pltpu.CompilerParams(
            dimension_semantics=("arbitrary",)),
        cost_estimate=cost,
    )(ze2, zq2)

    # TODO(synk): pallas_call has no automatic VJP; if this loss is trained
    # through, wrap commit_loss_from_latents in jax.custom_vjp.
    return out[0, 0]


if __name__ == "__main__":
    key = jax.random.PRNGKey(0)
    k_img, k_ze, k_zq = jax.random.split(key, 3)

    # Small deterministic example inputs.
    gt_image = jax.random.normal(k_img, (2, 4, 16, 16), dtype=jnp.float32)
    # Encoder / quantizer latents that produce the commit loss upstream.
    z_e = jax.random.normal(k_ze, (2, 16, 16, 32), dtype=jnp.float32)
    z_q = jax.random.normal(k_zq, (2, 16, 16, 32), dtype=jnp.float32)

    # Fused Pallas reduction producing the scalar commit loss.
    loss_commit = commit_loss_from_latents(z_e, z_q)
    jax.block_until_ready(loss_commit)

    # Module forward: pure pass-through of that scalar.
    model_output = {'loss_commit': loss_commit}
    loss, loss_dict = commit_loss_forward(model_output, gt_image)
    jax.block_until_ready(loss)
    jax.block_until_ready(loss_dict['loss_commit'])

    # Reference check.
    ref = jnp.mean((z_e - jax.lax.stop_gradient(z_q)) ** 2)
    assert loss.shape == ()
    assert loss.dtype == jnp.float32
    assert bool(jnp.allclose(loss, ref, rtol=1e-5, atol=1e-6))
    # Pass-through semantics: exact identity with the input scalar.
    assert bool(jnp.array_equal(loss, loss_commit))
    assert bool(jnp.array_equal(loss_dict['loss_commit'], loss_commit))

    print("KERNEL_OK")
</pallas_src>

<mosaic_0001>
module attributes {stable_mosaic.version = 11 : i64} {
  func.func @_commit_loss_reduce_kernel(%arg0: i32, %arg1: memref<512x32xf32, #tpu.memory_space<vmem>>, %arg2: memref<512x32xf32, #tpu.memory_space<vmem>>, %arg3: memref<1x1xf32, #tpu.memory_space<vmem>>, %arg4: memref<1x1xf32, #tpu.memory_space<vmem>>) attributes {dimension_semantics = [#tpu.dimension_semantics<arbitrary>], iteration_bounds = array<i64: 1>, scalar_prefetch = 0 : i64, scratch_operands = 1 : i64, tpu.core_type = #tpu.core_type<tc>, window_params = [{transform_indices = @transform_0, window_bounds = array<i64: 512, 32>}, {transform_indices = @transform_1, window_bounds = array<i64: 512, 32>}, {pipeline_mode = #tpu.pipeline_mode<synchronous>, transform_indices = @transform_2, window_bounds = array<i64: 1, 1>}]} {
    %c0_i32 = arith.constant 0 : i32
    %0 = arith.cmpi eq, %arg0, %c0_i32 : i32
    %1 = arith.extui %0 : i1 to i32
    %c0_i32_0 = arith.constant 0 : i32
    %2 = arith.cmpi ne, %1, %c0_i32_0 : i32
    scf.if %2 {
      %cst_10 = arith.constant 0.000000e+00 : f32
      %18 = vector.broadcast %cst_10 : f32 to vector<1x1xf32>
      %c0_11 = arith.constant 0 : index
      %c0_12 = arith.constant 0 : index
      %19 = vector.load %arg4[%c0_11, %c0_12] : memref<1x1xf32, #tpu.memory_space<vmem>>, vector<1x1xf32>
      tpu.vector_store %arg4[%c0_11, %c0_12], %18 {strides = array<i32>} : memref<1x1xf32, #tpu.memory_space<vmem>>, vector<1x1xf32>,
    } else {
    }
    %c0 = arith.constant 0 : index
    %c0_1 = arith.constant 0 : index
    %3 = vector.load %arg1[%c0, %c0_1] : memref<512x32xf32, #tpu.memory_space<vmem>>, vector<512x32xf32>
    %c0_2 = arith.constant 0 : index
    %c0_3 = arith.constant 0 : index
    %4 = vector.load %arg2[%c0_2, %c0_3] : memref<512x32xf32, #tpu.memory_space<vmem>>, vector<512x32xf32>
    %5 = arith.subf %3, %4 : vector<512x32xf32>
    %c0_4 = arith.constant 0 : index
    %c0_5 = arith.constant 0 : index
    %6 = vector.load %arg4[%c0_4, %c0_5] : memref<1x1xf32, #tpu.memory_space<vmem>>, vector<1x1xf32>
    %7 = arith.mulf %5, %5 : vector<512x32xf32>
    %8 = vector.shape_cast %7 : vector<512x32xf32> to vector<1x512x32xf32>
    %cst = arith.constant dense<0.000000e+00> : vector<1xf32>
    %9 = vector.multi_reduction <add>, %8, %cst [1, 2] : vector<1x512x32xf32> to vector<1xf32>
    %10 = vector.shape_cast %9 : vector<1xf32> to vector<1x1x1xf32>
    %11 = vector.extract %10[0, 0, 0] : f32 from vector<1x1x1xf32>
    %12 = vector.broadcast %11 : f32 to vector<1x1xf32>
    %13 = arith.addf %6, %12 : vector<1x1xf32>
    %c0_6 = arith.constant 0 : index
    %c0_7 = arith.constant 0 : index
    %14 = vector.load %arg4[%c0_6, %c0_7] : memref<1x1xf32, #tpu.memory_space<vmem>>, vector<1x1xf32>
    tpu.vector_store %arg4[%c0_6, %c0_7], %13 {strides = array<i32>} : memref<1x1xf32, #tpu.memory_space<vmem>>, vector<1x1xf32>,
    %c0_i32_8 = arith.constant 0 : i32
    %15 = arith.cmpi eq, %arg0, %c0_i32_8 : i32
    %16 = arith.extui %15 : i1 to i32
    %c0_i32_9 = arith.constant 0 : i32
    %17 = arith.cmpi ne, %16, %c0_i32_9 : i32
    scf.if %17 {
      %c0_10 = arith.constant 0 : index
      %c0_11 = arith.constant 0 : index
      %18 = vector.load %arg4[%c0_10, %c0_11] : memref<1x1xf32, #tpu.memory_space<vmem>>, vector<1x1xf32>
      %cst_12 = arith.constant 6.10351563E-5 : f32
      %19 = vector.broadcast %cst_12 : f32 to vector<1x1xf32>
      %20 = arith.mulf %18, %19 : vector<1x1xf32>
      %c0_13 = arith.constant 0 : index
      %c0_14 = arith.constant 0 : index
      %21 = vector.load %arg3[%c0_13, %c0_14] : memref<1x1xf32, #tpu.memory_space<vmem>>, vector<1x1xf32>
      tpu.vector_store %arg3[%c0_13, %c0_14], %20 {strides = array<i32>} : memref<1x1xf32, #tpu.memory_space<vmem>>, vector<1x1xf32>,
    } else {
    }
    return
  }
  func.func @transform_0(%arg0: i32) -> (i32, i32) {
    %c0_i32 = arith.constant 0 : i32
    %c0_i32_0 = arith.constant 0 : i32
    return %arg0, %c0_i32 : i32, i32
  }
  func.func @transform_1(%arg0: i32) -> (i32, i32) {
    %c0_i32 = arith.constant 0 : i32
    %c0_i32_0 = arith.constant 0 : i32
    return %arg0, %c0_i32 : i32, i32
  }
  func.func @transform_2(%arg0: i32) -> (i32, i32) {
    %c0_i32 = arith.constant 0 : i32
    %c0_i32_0 = arith.constant 0 : i32
    %c0_i32_1 = arith.constant 0 : i32
    return %c0_i32, %c0_i32_0 : i32, i32
  }
}

</mosaic_0001>

<llo_original>
// kernel: tpu_custom_call.1
$region0: #{tpu_custom_call.1}
  #allocation0 [shape = 'u32[]', space=smem, size = 0x4, offset = 0x4, fixed_abs, tag = 'smem constant byte address 0x4 - core index']
  #allocation1 [shape = 'u32[144,128]{1,0:T(1,128)}', space=vmem, size = 0x12000, scoped, tag = 'internal scratch']
  #allocation2 [shape = 'f32[1,1]{1,0:T(1,128)}', space=vmem, size = 0x200, scoped, tag = 'scratch operand']
  %s0 = inlined_call_operand.vmem [shape: f32[512,32], index: 0, kind: input, shape index: {}]
  %s1 = inlined_call_operand.vmem [shape: f32[512,32], index: 1, kind: input, shape index: {}]
  %s2 = inlined_call_operand.hbm [shape: f32[1,1], index: 2, kind: output, shape index: {}]
  %s3 = sld [smem:[#allocation0]]
  $region26: #{tpu_custom_call.1} parent=0
    _
  %s5 = ssub.s32 1, %s3
  %s6 = scalar_select 0, %s5, %s3
  $region1: #{tpu_custom_call.1} parent=0
    #allocation3 [shape = 'u8[512]{0}', space=vmem, size = 0x400, scoped, tag = 'output window, operand 0, single buffered']
    #allocation4 [shape = 's32[1]{0}', space=sflag, size = 0x4, scoped, tag = 'scoped memory for tpu_custom_call.1']
    %7 = vsyncpa [#allocation4], 0
    // Predicated region
    $region2: #{tpu_custom_call.1} parent=1 // pred_check
      _
    $region3: #{tpu_custom_call.1} parent=1 // pred_check_branch
      %9 = sbr.rel (0) target = $region5
    $region4: #{tpu_custom_call.1} parent=1 // pred_region
      _
    $region5: #{tpu_custom_call.1} parent=1 // pred_fallthru
      _
    // Predicated region
    $region6: #{tpu_custom_call.1} parent=1 // pred_check
      _
    $region7: #{tpu_custom_call.1} parent=1 // pred_check_branch
      %11 = sbr.rel (0) target = $region9
    $region8: #{tpu_custom_call.1} parent=1 // pred_region
      _
    $region9: #{tpu_custom_call.1} parent=1 // pred_fallthru
      _
    %p12 = scmp.eq.s32.totalorder 0, 0
    // Predicated region
    $region10: #{tpu_custom_call.1} parent=1 // pred_check
      %p13 = pneg %p12
    $region11: #{tpu_custom_call.1} parent=1 // pred_check_branch
      %15 = sbr.rel (%p13) target = $region13
    $region12: #{tpu_custom_call.1} parent=1 // pred_region
      %vm16 = vcmask 0
      %17 = vst.msk [vmem:[#allocation2] sm:$0x1] %vm16, 0.0
    $region13: #{tpu_custom_call.1} parent=1 // pred_fallthru
      _
    %v18 = vld [vmem:[%s0] sm:$0xff]
    %v19 = vld [vmem:[%s0 + $0x8] sm:$0xff]
    %v20 = vld [vmem:[%s0 + $0x10] sm:$0xff]
    %v21 = vld [vmem:[%s0 + $0x18] sm:$0xff]
    %v22 = vld [vmem:[%s0 + $0x20] sm:$0xff]
    %v23 = vld [vmem:[%s0 + $0x28] sm:$0xff]
    %v24 = vld [vmem:[%s0 + $0x30] sm:$0xff]
    %v25 = vld [vmem:[%s0 + $0x38] sm:$0xff]
    %v26 = vld [vmem:[%s0 + $0x40] sm:$0xff]
    %v27 = vld [vmem:[%s0 + $0x48] sm:$0xff]
    %v28 = vld [vmem:[%s0 + $0x50] sm:$0xff]
    %v29 = vld [vmem:[%s0 + $0x58] sm:$0xff]
    %v30 = vld [vmem:[%s0 + $0x60] sm:$0xff]
    %v31 = vld [vmem:[%s0 + $0x68] sm:$0xff]
    %v32 = vld [vmem:[%s0 + $0x70] sm:$0xff]
    %v33 = vld [vmem:[%s0 + $0x78] sm:$0xff]
    %v34 = vld [vmem:[%s0 + $0x80] sm:$0xff]
    %v35 = vld [vmem:[%s0 + $0x88] sm:$0xff]
    %v36 = vld [vmem:[%s0 + $0x90] sm:$0xff]
    %v37 = vld [vmem:[%s0 + $0x98] sm:$0xff]
    %v38 = vld [vmem:[%s0 + $0xa0] sm:$0xff]
    %v39 = vld [vmem:[%s0 + $0xa8] sm:$0xff]
    %v40 = vld [vmem:[%s0 + $0xb0] sm:$0xff]
    %v41 = vld [vmem:[%s0 + $0xb8] sm:$0xff]
    %v42 = vld [vmem:[%s0 + $0xc0] sm:$0xff]
    %v43 = vld [vmem:[%s0 + $0xc8] sm:$0xff]
    %v44 = vld [vmem:[%s0 + $0xd0] sm:$0xff]
    %v45 = vld [vmem:[%s0 + $0xd8] sm:$0xff]
    %v46 = vld [vmem:[%s0 + $0xe0] sm:$0xff]
    %v47 = vld [vmem:[%s0 + $0xe8] sm:$0xff]
    %v48 = vld [vmem:[%s0 + $0xf0] sm:$0xff]
    %v49 = vld [vmem:[%s0 + $0xf8] sm:$0xff]
    %v50 = vld [vmem:[%s0 + $0x100] sm:$0xff]
    %v51 = vld [vmem:[%s0 + $0x108] sm:$0xff]
    %v52 = vld [vmem:[%s0 + $0x110] sm:$0xff]
    %v53 = vld [vmem:[%s0 + $0x118] sm:$0xff]
    %v54 = vld [vmem:[%s0 + $0x120] sm:$0xff]
    %v55 = vld [vmem:[%s0 + $0x128] sm:$0xff]
    %v56 = vld [vmem:[%s0 + $0x130] sm:$0xff]
    %v57 = vld [vmem:[%s0 + $0x138] sm:$0xff]
    %v58 = vld [vmem:[%s0 + $0x140] sm:$0xff]
    %v59 = vld [vmem:[%s0 + $0x148] sm:$0xff]
    %v60 = vld [vmem:[%s0 + $0x150] sm:$0xff]
    %v61 = vld [vmem:[%s0 + $0x158] sm:$0xff]
    %v62 = vld [vmem:[%s0 + $0x160] sm:$0xff]
    %v63 = vld [vmem:[%s0 + $0x168] sm:$0xff]
    %v64 = vld [vmem:[%s0 + $0x170] sm:$0xff]
    %v65 = vld [vmem:[%s0 + $0x178] sm:$0xff]
    %v66 = vld [vmem:[%s0 + $0x180] sm:$0xff]
    %v67 = vld [vmem:[%s0 + $0x188] sm:$0xff]
    %v68 = vld [vmem:[%s0 + $0x190] sm:$0xff]
    %v69 = vld [vmem:[%s0 + $0x198] sm:$0xff]
    %v70 = vld [vmem:[%s0 + $0x1a0] sm:$0xff]
    %v71 = vld [vmem:[%s0 + $0x1a8] sm:$0xff]
    %v72 = vld [vmem:[%s0 + $0x1b0] sm:$0xff]
    %v73 = vld [vmem:[%s0 + $0x1b8] sm:$0xff]
    %v74 = vld [vmem:[%s0 + $0x1c0] sm:$0xff]
    %v75 = vld [vmem:[%s0 + $0x1c8] sm:$0xff]
    %v76 = vld [vmem:[%s0 + $0x1d0] sm:$0xff]
    %v77 = vld [vmem:[%s0 + $0x1d8] sm:$0xff]
    %v78 = vld [vmem:[%s0 + $0x1e0] sm:$0xff]
    %v79 = vld [vmem:[%s0 + $0x1e8] sm:$0xff]
    %v80 = vld [vmem:[%s0 + $0x1f0] sm:$0xff]
    %v81 = vld [vmem:[%s0 + $0x1f8] sm:$0xff]
    %v82 = vld [vmem:[%s1] sm:$0xff]
    %v83 = vld [vmem:[%s1 + $0x8] sm:$0xff]
    %v84 = vld [vmem:[%s1 + $0x10] sm:$0xff]
    %v85 = vld [vmem:[%s1 + $0x18] sm:$0xff]
    %v86 = vld [vmem:[%s1 + $0x20] sm:$0xff]
    %v87 = vld [vmem:[%s1 + $0x28] sm:$0xff]
    %v88 = vld [vmem:[%s1 + $0x30] sm:$0xff]
    %v89 = vld [vmem:[%s1 + $0x38] sm:$0xff]
    %v90 = vld [vmem:[%s1 + $0x40] sm:$0xff]
    %v91 = vld [vmem:[%s1 + $0x48] sm:$0xff]
    %v92 = vld [vmem:[%s1 + $0x50] sm:$0xff]
    %v93 = vld [vmem:[%s1 + $0x58] sm:$0xff]
    %v94 = vld [vmem:[%s1 + $0x60] sm:$0xff]
    %v95 = vld [vmem:[%s1 + $0x68] sm:$0xff]
    %v96 = vld [vmem:[%s1 + $0x70] sm:$0xff]
    %v97 = vld [vmem:[%s1 + $0x78] sm:$0xff]
    %v98 = vld [vmem:[%s1 + $0x80] sm:$0xff]
    %v99 = vld [vmem:[%s1 + $0x88] sm:$0xff]
    %v100 = vld [vmem:[%s1 + $0x90] sm:$0xff]
    %v101 = vld [vmem:[%s1 + $0x98] sm:$0xff]
    %v102 = vld [vmem:[%s1 + $0xa0] sm:$0xff]
    %v103 = vld [vmem:[%s1 + $0xa8] sm:$0xff]
    %v104 = vld [vmem:[%s1 + $0xb0] sm:$0xff]
    %v105 = vld [vmem:[%s1 + $0xb8] sm:$0xff]
    %v106 = vld [vmem:[%s1 + $0xc0] sm:$0xff]
    %v107 = vld [vmem:[%s1 + $0xc8] sm:$0xff]
    %v108 = vld [vmem:[%s1 + $0xd0] sm:$0xff]
    %v109 = vld [vmem:[%s1 + $0xd8] sm:$0xff]
    %v110 = vld [vmem:[%s1 + $0xe0] sm:$0xff]
    %v111 = vld [vmem:[%s1 + $0xe8] sm:$0xff]
    %v112 = vld [vmem:[%s1 + $0xf0] sm:$0xff]
    %v113 = vld [vmem:[%s1 + $0xf8] sm:$0xff]
    %v114 = vld [vmem:[%s1 + $0x100] sm:$0xff]
    %v115 = vld [vmem:[%s1 + $0x108] sm:$0xff]
    %v116 = vld [vmem:[%s1 + $0x110] sm:$0xff]
    %v117 = vld [vmem:[%s1 + $0x118] sm:$0xff]
    %v118 = vld [vmem:[%s1 + $0x120] sm:$0xff]
    %v119 = vld [vmem:[%s1 + $0x128] sm:$0xff]
    %v120 = vld [vmem:[%s1 + $0x130] sm:$0xff]
    %v121 = vld [vmem:[%s1 + $0x138] sm:$0xff]
    %v122 = vld [vmem:[%s1 + $0x140] sm:$0xff]
    %v123 = vld [vmem:[%s1 + $0x148] sm:$0xff]
    %v124 = vld [vmem:[%s1 + $0x150] sm:$0xff]
    %v125 = vld [vmem:[%s1 + $0x158] sm:$0xff]
    %v126 = vld [vmem:[%s1 + $0x160] sm:$0xff]
    %v127 = vld [vmem:[%s1 + $0x168] sm:$0xff]
    %v128 = vld [vmem:[%s1 + $0x170] sm:$0xff]
    %v129 = vld [vmem:[%s1 + $0x178] sm:$0xff]
    %v130 = vld [vmem:[%s1 + $0x180] sm:$0xff]
    %v131 = vld [vmem:[%s1 + $0x188] sm:$0xff]
    %v132 = vld [vmem:[%s1 + $0x190] sm:$0xff]
    %v133 = vld [vmem:[%s1 + $0x198] sm:$0xff]
    %v134 = vld [vmem:[%s1 + $0x1a0] sm:$0xff]
    %v135 = vld [vmem:[%s1 + $0x1a8] sm:$0xff]
    %v136 = vld [vmem:[%s1 + $0x1b0] sm:$0xff]
    %v137 = vld [vmem:[%s1 + $0x1b8] sm:$0xff]
    %v138 = vld [vmem:[%s1 + $0x1c0] sm:$0xff]
    %v139 = vld [vmem:[%s1 + $0x1c8] sm:$0xff]
    %v140 = vld [vmem:[%s1 + $0x1d0] sm:$0xff]
    %v141 = vld [vmem:[%s1 + $0x1d8] sm:$0xff]
    %v142 = vld [vmem:[%s1 + $0x1e0] sm:$0xff]
    %v143 = vld [vmem:[%s1 + $0x1e8] sm:$0xff]
    %v144 = vld [vmem:[%s1 + $0x1f0] sm:$0xff]
    %v145 = vld [vmem:[%s1 + $0x1f8] sm:$0xff]
    %v146 = vsub.f32 %v18, %v82
    %v147 = vsub.f32 %v19, %v83
    %v148 = vsub.f32 %v20, %v84
    %v149 = vsub.f32 %v21, %v85
    %v150 = vsub.f32 %v22, %v86
    %v151 = vsub.f32 %v23, %v87
    %v152 = vsub.f32 %v24, %v88
    %v153 = vsub.f32 %v25, %v89
    %v154 = vsub.f32 %v26, %v90
    %v155 = vsub.f32 %v27, %v91
    %v156 = vsub.f32 %v28, %v92
    %v157 = vsub.f32 %v29, %v93
    %v158 = vsub.f32 %v30, %v94
    %v159 = vsub.f32 %v31, %v95
    %v160 = vsub.f32 %v32, %v96
    %v161 = vsub.f32 %v33, %v97
    %v162 = vsub.f32 %v34, %v98
    %v163 = vsub.f32 %v35, %v99
    %v164 = vsub.f32 %v36, %v100
    %v165 = vsub.f32 %v37, %v101
    %v166 = vsub.f32 %v38, %v102
    %v167 = vsub.f32 %v39, %v103
    %v168 = vsub.f32 %v40, %v104
    %v169 = vsub.f32 %v41, %v105
    %v170 = vsub.f32 %v42, %v106
    %v171 = vsub.f32 %v43, %v107
    %v172 = vsub.f32 %v44, %v108
    %v173 = vsub.f32 %v45, %v109
    %v174 = vsub.f32 %v46, %v110
    %v175 = vsub.f32 %v47, %v111
    %v176 = vsub.f32 %v48, %v112
    %v177 = vsub.f32 %v49, %v113
    %v178 = vsub.f32 %v50, %v114
    %v179 = vsub.f32 %v51, %v115
    %v180 = vsub.f32 %v52, %v116
    %v181 = vsub.f32 %v53, %v117
    %v182 = vsub.f32 %v54, %v118
    %v183 = vsub.f32 %v55, %v119
    %v184 = vsub.f32 %v56, %v120
    %v185 = vsub.f32 %v57, %v121
    %v186 = vsub.f32 %v58, %v122
    %v187 = vsub.f32 %v59, %v123
    %v188 = vsub.f32 %v60, %v124
    %v189 = vsub.f32 %v61, %v125
    %v190 = vsub.f32 %v62, %v126
    %v191 = vsub.f32 %v63, %v127
    %v192 = vsub.f32 %v64, %v128
    %v193 = vsub.f32 %v65, %v129
    %v194 = vsub.f32 %v66, %v130
    %v195 = vsub.f32 %v67, %v131
    %v196 = vsub.f32 %v68, %v132
    %v197 = vsub.f32 %v69, %v133
    %v198 = vsub.f32 %v70, %v134
    %v199 = vsub.f32 %v71, %v135
    %v200 = vsub.f32 %v72, %v136
    %v201 = vsub.f32 %v73, %v137
    %v202 = vsub.f32 %v74, %v138
    %v203 = vsub.f32 %v75, %v139
    %v204 = vsub.f32 %v76, %v140
    %v205 = vsub.f32 %v77, %v141
    %v206 = vsub.f32 %v78, %v142
    %v207 = vsub.f32 %v79, %v143
    %v208 = vsub.f32 %v80, %v144
    %v209 = vsub.f32 %v81, %v145
    %v210 = vld [vmem:[#allocation2] sm:$0x1]
    %v211 = vmul.f32 %v146, %v146
    %v212 = vmul.f32 %v147, %v147
    %v213 = vmul.f32 %v148, %v148
    %v214 = vmul.f32 %v149, %v149
    %v215 = vmul.f32 %v150, %v150
    %v216 = vmul.f32 %v151, %v151
    %v217 = vmul.f32 %v152, %v152
    %v218 = vmul.f32 %v153, %v153
    %v219 = vmul.f32 %v154, %v154
    %v220 = vmul.f32 %v155, %v155
    %v221 = vmul.f32 %v156, %v156
    %v222 = vmul.f32 %v157, %v157
    %v223 = vmul.f32 %v158, %v158
    %v224 = vmul.f32 %v159, %v159
    %v225 = vmul.f32 %v160, %v160
    %v226 = vmul.f32 %v161, %v161
    %v227 = vmul.f32 %v162, %v162
    %v228 = vmul.f32 %v163, %v163
    %v229 = vmul.f32 %v164, %v164
    %v230 = vmul.f32 %v165, %v165
    %v231 = vmul.f32 %v166, %v166
    %v232 = vmul.f32 %v167, %v167
    %v233 = vmul.f32 %v168, %v168
    %v234 = vmul.f32 %v169, %v169
    %v235 = vmul.f32 %v170, %v170
    %v236 = vmul.f32 %v171, %v171
    %v237 = vmul.f32 %v172, %v172
    %v238 = vmul.f32 %v173, %v173
    %v239 = vmul.f32 %v174, %v174
    %v240 = vmul.f32 %v175, %v175
    %v241 = vmul.f32 %v176, %v176
    %v242 = vmul.f32 %v177, %v177
    %v243 = vmul.f32 %v178, %v178
    %v244 = vmul.f32 %v179, %v179
    %v245 = vmul.f32 %v180, %v180
    %v246 = vmul.f32 %v181, %v181
    %v247 = vmul.f32 %v182, %v182
    %v248 = vmul.f32 %v183, %v183
    %v249 = vmul.f32 %v184, %v184
    %v250 = vmul.f32 %v185, %v185
    %v251 = vmul.f32 %v186, %v186
    %v252 = vmul.f32 %v187, %v187
    %v253 = vmul.f32 %v188, %v188
    %v254 = vmul.f32 %v189, %v189
    %v255 = vmul.f32 %v190, %v190
    %v256 = vmul.f32 %v191, %v191
    %v257 = vmul.f32 %v192, %v192
    %v258 = vmul.f32 %v193, %v193
    %v259 = vmul.f32 %v194, %v194
    %v260 = vmul.f32 %v195, %v195
    %v261 = vmul.f32 %v196, %v196
    %v262 = vmul.f32 %v197, %v197
    %v263 = vmul.f32 %v198, %v198
    %v264 = vmul.f32 %v199, %v199
    %v265 = vmul.f32 %v200, %v200
    %v266 = vmul.f32 %v201, %v201
    %v267 = vmul.f32 %v202, %v202
    %v268 = vmul.f32 %v203, %v203
    %v269 = vmul.f32 %v204, %v204
    %v270 = vmul.f32 %v205, %v205
    %v271 = vmul.f32 %v206, %v206
    %v272 = vmul.f32 %v207, %v207
    %v273 = vmul.f32 %v208, %v208
    %v274 = vmul.f32 %v209, %v209
    %vm275 = vcmask 261120
    %v276 = vsel %vm275, %v211, 0.0
    %v277 = vsel %vm275, %v212, 0.0
    %v278 = vadd.f32 %v276, %v277
    %v279 = vsel %vm275, %v213, 0.0
    %v280 = vadd.f32 %v278, %v279
    %v281 = vsel %vm275, %v214, 0.0
    %v282 = vadd.f32 %v280, %v281
    %v283 = vsel %vm275, %v215, 0.0
    %v284 = vadd.f32 %v282, %v283
    %v285 = vsel %vm275, %v216, 0.0
    %v286 = vadd.f32 %v284, %v285
    %v287 = vsel %vm275, %v217, 0.0
    %v288 = vadd.f32 %v286, %v287
    %v289 = vsel %vm275, %v218, 0.0
    %v290 = vadd.f32 %v288, %v289
    %v291 = vsel %vm275, %v219, 0.0
    %v292 = vadd.f32 %v290, %v291
    %v293 = vsel %vm275, %v220, 0.0
    %v294 = vadd.f32 %v292, %v293
    %v295 = vsel %vm275, %v221, 0.0
    %v296 = vadd.f32 %v294, %v295
    %v297 = vsel %vm275, %v222, 0.0
    %v298 = vadd.f32 %v296, %v297
    %v299 = vsel %vm275, %v223, 0.0
    %v300 = vadd.f32 %v298, %v299
    %v301 = vsel %vm275, %v224, 0.0
    %v302 = vadd.f32 %v300, %v301
    %v303 = vsel %vm275, %v225, 0.0
    %v304 = vadd.f32 %v302, %v303
    %v305 = vsel %vm275, %v226, 0.0
    %v306 = vadd.f32 %v304, %v305
    %v307 = vsel %vm275, %v227, 0.0
    %v308 = vadd.f32 %v306, %v307
    %v309 = vsel %vm275, %v228, 0.0
    %v310 = vadd.f32 %v308, %v309
    %v311 = vsel %vm275, %v229, 0.0
    %v312 = vadd.f32 %v310, %v311
    %v313 = vsel %vm275, %v230, 0.0
    %v314 = vadd.f32 %v312, %v313
    %v315 = vsel %vm275, %v231, 0.0
    %v316 = vadd.f32 %v314, %v315
    %v317 = vsel %vm275, %v232, 0.0
    %v318 = vadd.f32 %v316, %v317
    %v319 = vsel %vm275, %v233, 0.0
    %v320 = vadd.f32 %v318, %v319
    %v321 = vsel %vm275, %v234, 0.0
    %v322 = vadd.f32 %v320, %v321
    %v323 = vsel %vm275, %v235, 0.0
    %v324 = vadd.f32 %v322, %v323
    %v325 = vsel %vm275, %v236, 0.0
    %v326 = vadd.f32 %v324, %v325
    %v327 = vsel %vm275, %v237, 0.0
    %v328 = vadd.f32 %v326, %v327
    %v329 = vsel %vm275, %v238, 0.0
    %v330 = vadd.f32 %v328, %v329
    %v331 = vsel %vm275, %v239, 0.0
    %v332 = vadd.f32 %v330, %v331
    %v333 = vsel %vm275, %v240, 0.0
    %v334 = vadd.f32 %v332, %v333
    %v335 = vsel %vm275, %v241, 0.0
    %v336 = vadd.f32 %v334, %v335
    %v337 = vsel %vm275, %v242, 0.0
    %v338 = vadd.f32 %v336, %v337
    %v339 = vsel %vm275, %v243, 0.0
    %v340 = vadd.f32 %v338, %v339
    %v341 = vsel %vm275, %v244, 0.0
    %v342 = vadd.f32 %v340, %v341
    %v343 = vsel %vm275, %v245, 0.0
    %v344 = vadd.f32 %v342, %v343
    %v345 = vsel %vm275, %v246, 0.0
    %v346 = vadd.f32 %v344, %v345
    %v347 = vsel %vm275, %v247, 0.0
    %v348 = vadd.f32 %v346, %v347
    %v349 = vsel %vm275, %v248, 0.0
    %v350 = vadd.f32 %v348, %v349
    %v351 = vsel %vm275, %v249, 0.0
    %v352 = vadd.f32 %v350, %v351
    %v353 = vsel %vm275, %v250, 0.0
    %v354 = vadd.f32 %v352, %v353
    %v355 = vsel %vm275, %v251, 0.0
    %v356 = vadd.f32 %v354, %v355
    %v357 = vsel %vm275, %v252, 0.0
    %v358 = vadd.f32 %v356, %v357
    %v359 = vsel %vm275, %v253, 0.0
    %v360 = vadd.f32 %v358, %v359
    %v361 = vsel %vm275, %v254, 0.0
    %v362 = vadd.f32 %v360, %v361
    %v363 = vsel %vm275, %v255, 0.0
    %v364 = vadd.f32 %v362, %v363
    %v365 = vsel %vm275, %v256, 0.0
    %v366 = vadd.f32 %v364, %v365
    %v367 = vsel %vm275, %v257, 0.0
    %v368 = vadd.f32 %v366, %v367
    %v369 = vsel %vm275, %v258, 0.0
    %v370 = vadd.f32 %v368, %v369
    %v371 = vsel %vm275, %v259, 0.0
    %v372 = vadd.f32 %v370, %v371
    %v373 = vsel %vm275, %v260, 0.0
    %v374 = vadd.f32 %v372, %v373
    %v375 = vsel %vm275, %v261, 0.0
    %v376 = vadd.f32 %v374, %v375
    %v377 = vsel %vm275, %v262, 0.0
    %v378 = vadd.f32 %v376, %v377
    %v379 = vsel %vm275, %v263, 0.0
    %v380 = vadd.f32 %v378, %v379
    %v381 = vsel %vm275, %v264, 0.0
    %v382 = vadd.f32 %v380, %v381
    %v383 = vsel %vm275, %v265, 0.0
    %v384 = vadd.f32 %v382, %v383
    %v385 = vsel %vm275, %v266, 0.0
    %v386 = vadd.f32 %v384, %v385
    %v387 = vsel %vm275, %v267, 0.0
    %v388 = vadd.f32 %v386, %v387
    %v389 = vsel %vm275, %v268, 0.0
    %v390 = vadd.f32 %v388, %v389
    %v391 = vsel %vm275, %v269, 0.0
    %v392 = vadd.f32 %v390, %v391
    %v393 = vsel %vm275, %v270, 0.0
    %v394 = vadd.f32 %v392, %v393
    %v395 = vsel %vm275, %v271, 0.0
    %v396 = vadd.f32 %v394, %v395
    %v397 = vsel %vm275, %v272, 0.0
    %v398 = vadd.f32 %v396, %v397
    %v399 = vsel %vm275, %v273, 0.0
    %v400 = vadd.f32 %v398, %v399
    %v401 = vsel %vm275, %v274, 0.0
    %v402 = vadd.f32 %v400, %v401
    %403 = vadd.xlane.f32.xlu0 %v402
    %v404 = vpop.xlane.xlu0 %403
    %v405 = vrot.slane %v404, 4
    %v406 = vadd.f32 %v404, %v405
    %v407 = vrot.slane %v406, 2
    %v408 = vadd.f32 %v406, %v407
    %v409 = vrot.slane %v408, 1
    %v410 = vadd.f32 %v408, %v409
    %s411 = vtos %v410
    %v412 = vstv %s411
    %v413 = vadd.f32 %v210, %v412
    %vm414 = vcmask 0
    %415 = vst.msk [vmem:[#allocation2] sm:$0x1] %vm414, %v413
    // Predicated region
    $region14: #{tpu_custom_call.1} parent=1 // pred_check
      %p416 = pneg %p12
    $region15: #{tpu_custom_call.1} parent=1 // pred_check_branch
      %418 = sbr.rel (%p416) target = $region17
    $region16: #{tpu_custom_call.1} parent=1 // pred_region
      %v419 = vld [vmem:[#allocation2] sm:$0x1]
      %v420 = vmul.f32 %v419, 6.1035156e-05
      %421 = vst.msk [vmem:[#allocation3] sm:$0x1] %vm414, %v420
    $region17: #{tpu_custom_call.1} parent=1 // pred_fallthru
      _
    // Predicated region
    $region18: #{tpu_custom_call.1} parent=1 // pred_check
      _
    $region19: #{tpu_custom_call.1} parent=1 // pred_check_branch
      %423 = sbr.rel (0) target = $region21
    $region20: #{tpu_custom_call.1} parent=1 // pred_region
      %s425 = ssub.s32 16, 16
      %426 = vsyncadd [#allocation4], %s425
      %s428 = sshll.u32 [#allocation3], 4
      %s429 = int_to_ptr.vmem [resolvable:$true] %s428
      %431 = dma.vmem_to_hbm [thread:$0]  %s429, 16, %s2, [#allocation4]
    $region21: #{tpu_custom_call.1} parent=1 // pred_fallthru
      _
    // Predicated region
    $region22: #{tpu_custom_call.1} parent=1 // pred_check
      _
    $region23: #{tpu_custom_call.1} parent=1 // pred_check_branch
      %433 = sbr.rel (0) target = $region25
    $region24: #{tpu_custom_call.1} parent=1 // pred_region
      %434 = dma.done [#allocation4], 16
    $region25: #{tpu_custom_call.1} parent=1 // pred_fallthru
      _
    %435 = vsyncpa [#allocation4], 1

</llo_original>
